<compile_context>
chip_gen: v7x
topology: tpu7x:2x2x1
jax: 0.10.0
libtpu: 0.0.40
codegen_flags: <defaults>
</compile_context>

<pallas_src>
import functools

import jax
import jax.numpy as jnp
from jax import lax
from jax.experimental import pallas as pl
from jax.experimental.pallas import tpu as pltpu


def _round_up(x, m):
    return (x + m - 1) // m * m


def basic_block_kernel(x_ref, mask_ref, w1_ref, b1_ref, w2_ref, b2_ref,
                       out_ref, *, Wp, compute_dtype):
    """One lane-block of `batch_block` zero-padded, flattened frames.

    x_ref:    (Cp, Lb)      f32            input frames (also the residual)
    mask_ref: (1, Lb)       f32            1.0 at interior pixels, 0.0 on pad
                                           ring / lane tail
    w1_ref:   (Cp, 9*Cp)    compute_dtype  conv1 weight * bn1 scale, tap-stacked
    b1_ref:   (Cp, 1)       f32            bn1 bias (beta - mean*scale)
    w2_ref:   (Cp, 9*Cp)    compute_dtype  conv2 weight * bn2 scale
    b2_ref:   (Cp, 1)       f32            bn2 bias
    out_ref:  (Cp, Lb)      f32            output in the same padded frame
    """
    x = x_ref[...]                      # (Cp, Lb) f32, kept f32 for residual
    interior = mask_ref[...]            # (1, Lb)
    Lb = x.shape[1]

    # Tap shifts in the flattened padded frame, (ky, kx) row-major — must match
    # the (Cout, kh, kw, Cin) weight stacking order built in the wrapper.
    shifts = [(ky - 1) * Wp + (kx - 1) for ky in range(3) for kx in range(3)]

    def conv3x3(a, w_ref):
        # a: (Cp, Lb) compute_dtype.  Build the im2col-stacked (9*Cp, Lb)
        # operand (8 XLU lane-rolls; center tap is `a` itself) and contract all
        # 9 taps with a single MXU matmul, f32 accumulation.
        slabs = [a if d == 0 else pltpu.roll(a, (-d) % Lb, axis=1)
                 for d in shifts]
        stacked = jnp.concatenate(slabs, axis=0)            # (9*Cp, Lb)
        return jnp.dot(w_ref[...], stacked,
                       preferred_element_type=jnp.float32)   # (Cp, Lb) f32

    # conv1 (bn1 scale folded into weights) -> bias -> ReLU, then re-zero the
    # pad ring / lane tail so conv2 sees proper zero padding.
    h = conv3x3(x.astype(compute_dtype), w1_ref)
    h = jnp.maximum(h + b1_ref[...], 0.0) * interior

    # conv2 (bn2 scale folded) -> bias -> identity residual -> ReLU.
    h2 = conv3x3(h.astype(compute_dtype), w2_ref)
    out_ref[...] = jnp.maximum(h2 + b2_ref[...] + x, 0.0)


def basic_block_pallas(x_nchw, w1_oihw, bn1, w2_oihw, bn2, *, eps=1e-5,
                       compute_dtype=jnp.bfloat16, batch_block=None):
    """x_nchw: (N, C, H, W) f32.  w*_oihw: (Cout, Cin, 3, 3) (PyTorch layout).
    bn*: (gamma, beta, running_mean, running_var) — eval-mode BatchNorm."""
    N, C, H, W = x_nchw.shape
    Cout = w1_oihw.shape[0]
    assert Cout == C, "identity residual requires in_channel == out_channel"
    # TODO(synk): stride > 1 / downsample branch of BasicBlock not implemented
    # (module defaults: stride=1, downsample=None -> identity residual).

    Hp, Wp = H + 2, W + 2
    L = Hp * Wp
    Lp = _round_up(L, 128)          # lane-dense frames -> unmasked full-width vst
    Cp = _round_up(C, 16)           # aligned sublane stacking for f32 and bf16

    if batch_block is None:
        # Amortize per-step overhead but keep >=2 grid steps so the "parallel"
        # axis can still split across the two TensorCores on v7x.
        batch_block = max(1, N // 2)
        while N % batch_block:
            batch_block -= 1
    assert N % batch_block == 0
    Lb = batch_block * Lp

    def fold(w_oihw, bn):
        gamma, beta, mean, var = bn
        s = gamma / jnp.sqrt(var + eps)                      # (Cout,)
        b = beta - mean * s                                  # (Cout,)
        w = w_oihw.astype(jnp.float32) * s[:, None, None, None]   # (Co,Ci,3,3)
        w = jnp.transpose(w, (0, 2, 3, 1))                   # (Co, kh, kw, Ci)
        wp = jnp.zeros((Cp, 3, 3, Cp), jnp.float32).at[:C, :, :, :C].set(w)
        bp = jnp.zeros((Cp, 1), jnp.float32).at[:C, 0].set(b)
        return wp.reshape(Cp, 9 * Cp).astype(compute_dtype), bp

    w1f, b1 = fold(w1_oihw, bn1)
    w2f, b2 = fold(w2_oihw, bn2)

    # Zero-pad spatially, flatten the padded frame, pad lanes to a 128-multiple
    # and channels to Cp, then fold batch onto the lane axis: (Cp, N*Lp).
    xpad = jnp.pad(x_nchw.astype(jnp.float32), ((0, 0), (0, 0), (1, 1), (1, 1)))
    xflat = jnp.pad(xpad.reshape(N, C, L), ((0, 0), (0, Cp - C), (0, Lp - L)))
    xlanes = jnp.transpose(xflat, (1, 0, 2)).reshape(Cp, N * Lp)

    # Interior mask (1 inside HxW, 0 on pad ring / lane tail), tiled over the
    # frames of one lane block.
    yy, xx = jnp.meshgrid(jnp.arange(Hp), jnp.arange(Wp), indexing="ij")
    m = (((yy >= 1) & (yy <= H) & (xx >= 1) & (xx <= W))
         .astype(jnp.float32).reshape(1, L))
    mask = jnp.tile(jnp.pad(m, ((0, 0), (0, Lp - L))), (1, batch_block))

    kernel = functools.partial(basic_block_kernel, Wp=Wp,
                               compute_dtype=compute_dtype)

    out_lanes = pl.pallas_call(
        kernel,
        out_shape=jax.ShapeDtypeStruct((Cp, N * Lp), jnp.float32),
        grid=(N // batch_block,),
        in_specs=[
            pl.BlockSpec((Cp, Lb), lambda n: (0, n)),
            pl.BlockSpec((1, Lb), lambda n: (0, 0)),
            pl.BlockSpec((Cp, 9 * Cp), lambda n: (0, 0)),
            pl.BlockSpec((Cp, 1), lambda n: (0, 0)),
            pl.BlockSpec((Cp, 9 * Cp), lambda n: (0, 0)),
            pl.BlockSpec((Cp, 1), lambda n: (0, 0)),
        ],
        out_specs=pl.BlockSpec((Cp, Lb), lambda n: (0, n)),
        compiler_params=pltpu.CompilerParams(
            dimension_semantics=("parallel",),
            vmem_limit_bytes=32 * 1024 * 1024,   # within v7x 64 MiB physical
        ),
    )(xlanes, mask, w1f, b1, w2f, b2)

    # TODO(synk): when chaining BasicBlocks, keep the (Cp, N*Lp) lane layout
    # between blocks instead of this crop -> NCHW round trip.
    out = out_lanes.reshape(Cp, N, Lp).transpose(1, 0, 2)[:, :C, :L]
    return out.reshape(N, C, Hp, Wp)[:, :, 1:H + 1, 1:W + 1]


def basic_block_reference(x, w1_oihw, bn1, w2_oihw, bn2, eps=1e-5):
    """Pure-JAX reference (lax.conv, NCHW/OIHW) for correctness check."""
    dn = ("NCHW", "OIHW", "NCHW")

    def conv(a, w):
        return lax.conv_general_dilated(a, w, window_strides=(1, 1),
                                        padding=((1, 1), (1, 1)),
                                        dimension_numbers=dn)

    def bn(a, params):
        g, b, m, v = (p[None, :, None, None] for p in params)
        return (a - m) / jnp.sqrt(v + eps) * g + b

    h = jnp.maximum(bn(conv(x, w1_oihw), bn1), 0.0)
    h = bn(conv(h, w2_oihw), bn2)
    return jnp.maximum(h + x, 0.0)


if __name__ == "__main__":
    N, C, H, W = 2, 4, 16, 16          # in_channel = out_channel = 4, stride = 1
    key = jax.random.PRNGKey(0)
    ks = jax.random.split(key, 11)

    x = jax.random.normal(ks[0], (N, C, H, W), jnp.float32)

    # Conv weights in PyTorch OIHW layout: (Cout, Cin, 3, 3).
    w1 = jax.random.normal(ks[1], (C, C, 3, 3), jnp.float32) * 0.1
    w2 = jax.random.normal(ks[2], (C, C, 3, 3), jnp.float32) * 0.1

    bn1 = (jax.random.uniform(ks[3], (C,), minval=0.5, maxval=1.5),
           jax.random.normal(ks[4], (C,)) * 0.1,
           jax.random.normal(ks[5], (C,)) * 0.1,
           jax.random.uniform(ks[6], (C,), minval=0.5, maxval=1.5))
    bn2 = (jax.random.uniform(ks[7], (C,), minval=0.5, maxval=1.5),
           jax.random.normal(ks[8], (C,)) * 0.1,
           jax.random.normal(ks[9], (C,)) * 0.1,
           jax.random.uniform(ks[10], (C,), minval=0.5, maxval=1.5))

    ref = jax.block_until_ready(basic_block_reference(x, w1, bn1, w2, bn2))

    # f32 MXU path (tight tolerance).
    out_f32 = jax.block_until_ready(
        basic_block_pallas(x, w1, bn1, w2, bn2, compute_dtype=jnp.float32))
    assert out_f32.shape == (N, C, H, W), out_f32.shape
    err_f32 = float(jnp.max(jnp.abs(out_f32 - ref)))
    assert jnp.allclose(out_f32, ref, atol=1e-3, rtol=1e-3), err_f32

    # bf16 MXU operands (default; f32 accumulation / bias / residual).
    out_bf16 = jax.block_until_ready(
        basic_block_pallas(x, w1, bn1, w2, bn2, compute_dtype=jnp.bfloat16))
    assert out_bf16.shape == (N, C, H, W), out_bf16.shape
    err_bf16 = float(jnp.max(jnp.abs(out_bf16 - ref)))
    assert jnp.allclose(out_bf16, ref, atol=1e-1, rtol=1e-1), err_bf16

    print("KERNEL_OK")
</pallas_src>

<mosaic_0001>
module attributes {stable_mosaic.version = 11 : i64} {
  func.func @basic_block_kernel(%arg0: i32, %arg1: memref<16x384xf32, #tpu.memory_space<vmem>>, %arg2: memref<1x384xf32, #tpu.memory_space<vmem>>, %arg3: memref<16x144xf32, #tpu.memory_space<vmem>>, %arg4: memref<16x1xf32, #tpu.memory_space<vmem>>, %arg5: memref<16x144xf32, #tpu.memory_space<vmem>>, %arg6: memref<16x1xf32, #tpu.memory_space<vmem>>, %arg7: memref<16x384xf32, #tpu.memory_space<vmem>>) attributes {dimension_semantics = [#tpu.dimension_semantics<parallel>], iteration_bounds = array<i64: 2>, scalar_prefetch = 0 : i64, scratch_operands = 0 : i64, tpu.core_type = #tpu.core_type<tc>, window_params = [{transform_indices = @transform_0, window_bounds = array<i64: 16, 384>}, {pipeline_mode = #tpu.pipeline_mode<synchronous>, transform_indices = @transform_1, window_bounds = array<i64: 1, 384>}, {pipeline_mode = #tpu.pipeline_mode<synchronous>, transform_indices = @transform_2, window_bounds = array<i64: 16, 144>}, {pipeline_mode = #tpu.pipeline_mode<synchronous>, transform_indices = @transform_3, window_bounds = array<i64: 16, 1>}, {pipeline_mode = #tpu.pipeline_mode<synchronous>, transform_indices = @transform_4, window_bounds = array<i64: 16, 144>}, {pipeline_mode = #tpu.pipeline_mode<synchronous>, transform_indices = @transform_5, window_bounds = array<i64: 16, 1>}, {transform_indices = @transform_6, window_bounds = array<i64: 16, 384>}]} {
    %c0 = arith.constant 0 : index
    %c0_0 = arith.constant 0 : index
    %0 = vector.load %arg1[%c0, %c0_0] : memref<16x384xf32, #tpu.memory_space<vmem>>, vector<16x384xf32>
    %c0_1 = arith.constant 0 : index
    %c0_2 = arith.constant 0 : index
    %1 = vector.load %arg2[%c0_1, %c0_2] : memref<1x384xf32, #tpu.memory_space<vmem>>, vector<1x384xf32>
    %c19_i32 = arith.constant 19 : i32
    %2 = tpu.dynamic_rotate %0 by %c19_i32 dim 1 : vector<16x384xf32>, i32 -> vector<16x384xf32>
    %c18_i32 = arith.constant 18 : i32
    %3 = tpu.dynamic_rotate %0 by %c18_i32 dim 1 : vector<16x384xf32>, i32 -> vector<16x384xf32>
    %c17_i32 = arith.constant 17 : i32
    %4 = tpu.dynamic_rotate %0 by %c17_i32 dim 1 : vector<16x384xf32>, i32 -> vector<16x384xf32>
    %c1_i32 = arith.constant 1 : i32
    %5 = tpu.dynamic_rotate %0 by %c1_i32 dim 1 : vector<16x384xf32>, i32 -> vector<16x384xf32>
    %c383_i32 = arith.constant 383 : i32
    %6 = tpu.dynamic_rotate %0 by %c383_i32 dim 1 : vector<16x384xf32>, i32 -> vector<16x384xf32>
    %c367_i32 = arith.constant 367 : i32
    %7 = tpu.dynamic_rotate %0 by %c367_i32 dim 1 : vector<16x384xf32>, i32 -> vector<16x384xf32>
    %c366_i32 = arith.constant 366 : i32
    %8 = tpu.dynamic_rotate %0 by %c366_i32 dim 1 : vector<16x384xf32>, i32 -> vector<16x384xf32>
    %c365_i32 = arith.constant 365 : i32
    %9 = tpu.dynamic_rotate %0 by %c365_i32 dim 1 : vector<16x384xf32>, i32 -> vector<16x384xf32>
    %10 = tpu.concatenate %2, %3, %4, %5, %0, %6, %7, %8, %9 in 0 : vector<16x384xf32>, vector<16x384xf32>, vector<16x384xf32>, vector<16x384xf32>, vector<16x384xf32>, vector<16x384xf32>, vector<16x384xf32>, vector<16x384xf32>, vector<16x384xf32> -> vector<144x384xf32>
    %c0_3 = arith.constant 0 : index
    %c0_4 = arith.constant 0 : index
    %11 = vector.load %arg3[%c0_3, %c0_4] : memref<16x144xf32, #tpu.memory_space<vmem>>, vector<16x144xf32>
    %cst = arith.constant dense<0.000000e+00> : vector<16x384xf32>
    %12 = tpu.matmul %11, %10, %cst {dimension_numbers = #tpu.dot_dimension_numbers<[1], [0], [0], [1], [0, 0, 1, 1], [], []>} : vector<16x144xf32>, vector<144x384xf32>, vector<16x384xf32> -> vector<16x384xf32>
    %c0_5 = arith.constant 0 : index
    %c0_6 = arith.constant 0 : index
    %13 = vector.load %arg4[%c0_5, %c0_6] : memref<16x1xf32, #tpu.memory_space<vmem>>, vector<16x1xf32>
    %14 = vector.broadcast %13 : vector<16x1xf32> to vector<16x384xf32>
    %15 = arith.addf %12, %14 : vector<16x384xf32>
    %cst_7 = arith.constant 0.000000e+00 : f32
    %16 = vector.broadcast %cst_7 : f32 to vector<16x384xf32>
    %17 = arith.maximumf %15, %16 : vector<16x384xf32>
    %18 = vector.broadcast %1 : vector<1x384xf32> to vector<16x384xf32>
    %19 = arith.mulf %17, %18 : vector<16x384xf32>
    %c19_i32_8 = arith.constant 19 : i32
    %20 = tpu.dynamic_rotate %19 by %c19_i32_8 dim 1 : vector<16x384xf32>, i32 -> vector<16x384xf32>
    %c18_i32_9 = arith.constant 18 : i32
    %21 = tpu.dynamic_rotate %19 by %c18_i32_9 dim 1 : vector<16x384xf32>, i32 -> vector<16x384xf32>
    %c17_i32_10 = arith.constant 17 : i32
    %22 = tpu.dynamic_rotate %19 by %c17_i32_10 dim 1 : vector<16x384xf32>, i32 -> vector<16x384xf32>
    %c1_i32_11 = arith.constant 1 : i32
    %23 = tpu.dynamic_rotate %19 by %c1_i32_11 dim 1 : vector<16x384xf32>, i32 -> vector<16x384xf32>
    %c383_i32_12 = arith.constant 383 : i32
    %24 = tpu.dynamic_rotate %19 by %c383_i32_12 dim 1 : vector<16x384xf32>, i32 -> vector<16x384xf32>
    %c367_i32_13 = arith.constant 367 : i32
    %25 = tpu.dynamic_rotate %19 by %c367_i32_13 dim 1 : vector<16x384xf32>, i32 -> vector<16x384xf32>
    %c366_i32_14 = arith.constant 366 : i32
    %26 = tpu.dynamic_rotate %19 by %c366_i32_14 dim 1 : vector<16x384xf32>, i32 -> vector<16x384xf32>
    %c365_i32_15 = arith.constant 365 : i32
    %27 = tpu.dynamic_rotate %19 by %c365_i32_15 dim 1 : vector<16x384xf32>, i32 -> vector<16x384xf32>
    %28 = tpu.concatenate %20, %21, %22, %23, %19, %24, %25, %26, %27 in 0 : vector<16x384xf32>, vector<16x384xf32>, vector<16x384xf32>, vector<16x384xf32>, vector<16x384xf32>, vector<16x384xf32>, vector<16x384xf32>, vector<16x384xf32>, vector<16x384xf32> -> vector<144x384xf32>
    %c0_16 = arith.constant 0 : index
    %c0_17 = arith.constant 0 : index
    %29 = vector.load %arg5[%c0_16, %c0_17] : memref<16x144xf32, #tpu.memory_space<vmem>>, vector<16x144xf32>
    %cst_18 = arith.constant dense<0.000000e+00> : vector<16x384xf32>
    %30 = tpu.matmul %29, %28, %cst_18 {dimension_numbers = #tpu.dot_dimension_numbers<[1], [0], [0], [1], [0, 0, 1, 1], [], []>} : vector<16x144xf32>, vector<144x384xf32>, vector<16x384xf32> -> vector<16x384xf32>
    %c0_19 = arith.constant 0 : index
    %c0_20 = arith.constant 0 : index
    %31 = vector.load %arg6[%c0_19, %c0_20] : memref<16x1xf32, #tpu.memory_space<vmem>>, vector<16x1xf32>
    %32 = vector.broadcast %31 : vector<16x1xf32> to vector<16x384xf32>
    %33 = arith.addf %30, %32 : vector<16x384xf32>
    %34 = arith.addf %33, %0 : vector<16x384xf32>
    %cst_21 = arith.constant 0.000000e+00 : f32
    %35 = vector.broadcast %cst_21 : f32 to vector<16x384xf32>
    %36 = arith.maximumf %34, %35 : vector<16x384xf32>
    %c0_22 = arith.constant 0 : index
    %c0_23 = arith.constant 0 : index
    %37 = vector.load %arg7[%c0_22, %c0_23] : memref<16x384xf32, #tpu.memory_space<vmem>>, vector<16x384xf32>
    tpu.vector_store %arg7[%c0_22, %c0_23], %36 {strides = array<i32>} : memref<16x384xf32, #tpu.memory_space<vmem>>, vector<16x384xf32>,
    return
  }
  func.func @transform_0(%arg0: i32) -> (i32, i32) {
    %c0_i32 = arith.constant 0 : i32
    %c0_i32_0 = arith.constant 0 : i32
    return %c0_i32, %arg0 : i32, i32
  }
  func.func @transform_1(%arg0: i32) -> (i32, i32) {
    %c0_i32 = arith.constant 0 : i32
    %c0_i32_0 = arith.constant 0 : i32
    %c0_i32_1 = arith.constant 0 : i32
    return %c0_i32, %c0_i32_0 : i32, i32
  }
  func.func @transform_2(%arg0: i32) -> (i32, i32) {
    %c0_i32 = arith.constant 0 : i32
    %c0_i32_0 = arith.constant 0 : i32
    %c0_i32_1 = arith.constant 0 : i32
    return %c0_i32, %c0_i32_0 : i32, i32
  }
  func.func @transform_3(%arg0: i32) -> (i32, i32) {
    %c0_i32 = arith.constant 0 : i32
    %c0_i32_0 = arith.constant 0 : i32
    %c0_i32_1 = arith.constant 0 : i32
    return %c0_i32, %c0_i32_0 : i32, i32
  }
  func.func @transform_4(%arg0: i32) -> (i32, i32) {
    %c0_i32 = arith.constant 0 : i32
    %c0_i32_0 = arith.constant 0 : i32
    %c0_i32_1 = arith.constant 0 : i32
    return %c0_i32, %c0_i32_0 : i32, i32
  }
  func.func @transform_5(%arg0: i32) -> (i32, i32) {
    %c0_i32 = arith.constant 0 : i32
    %c0_i32_0 = arith.constant 0 : i32
    %c0_i32_1 = arith.constant 0 : i32
    return %c0_i32, %c0_i32_0 : i32, i32
  }
  func.func @transform_6(%arg0: i32) -> (i32, i32) {
    %c0_i32 = arith.constant 0 : i32
    %c0_i32_0 = arith.constant 0 : i32
    return %c0_i32, %arg0 : i32, i32
  }
}

</mosaic_0001>

<llo_original>
// kernel: tpu_custom_call.1
$region0: #{tpu_custom_call.1}
  #allocation0 [shape = 'u32[]', space=smem, size = 0x4, offset = 0x4, fixed_abs, tag = 'smem constant byte address 0x4 - core index']
  #allocation1 [shape = 'u32[144,128]{1,0:T(1,128)}', space=vmem, size = 0x12000, scoped, tag = 'internal scratch']
  %s0 = inlined_call_operand.hbm [shape: f32[16,768], index: 0, kind: input, shape index: {}]
  %s1 = inlined_call_operand.vmem [shape: f32[1,384], index: 1, kind: input, shape index: {}]
  %s2 = inlined_call_operand.vmem [shape: f32[16,144], index: 2, kind: input, shape index: {}]
  %s3 = inlined_call_operand.vmem [shape: f32[16,1], index: 3, kind: input, shape index: {}]
  %s4 = inlined_call_operand.hbm [shape: f32[16,144], index: 4, kind: input, shape index: {}]
  %s5 = inlined_call_operand.vmem [shape: f32[16,1], index: 5, kind: input, shape index: {}]
  %s6 = inlined_call_operand.hbm [shape: f32[16,768], index: 6, kind: output, shape index: {}]
  %s7 = sld [smem:[#allocation0]]
  $region65: #{tpu_custom_call.1} parent=0
    _
  %s9 = ssub.s32 1, %s7
  %s10 = scalar_select 0, %s9, %s7
  $region1: #{tpu_custom_call.1} parent=0
    #allocation2 [shape = 'u8[49152]{0}', space=vmem, size = 0xc000, scoped, tag = 'input window, operand 0']
    #allocation3 [shape = 's32[2]{0}', space=sflag, size = 0x8, scoped, tag = 'scoped memory for tpu_custom_call.1']
    #allocation4 [shape = 's32[2]{0}', space=sflag, size = 0x8, scoped, tag = 'scoped memory for tpu_custom_call.1']
    #allocation5 [shape = 'u8[16384]{0}', space=vmem, size = 0x4000, scoped, tag = 'input window, operand 4, single buffered']
    #allocation6 [shape = 's32[1]{0}', space=sflag, size = 0x4, scoped, tag = 'scoped memory for tpu_custom_call.1']
    #allocation7 [shape = 'u8[49152]{0}', space=vmem, size = 0xc000, scoped, tag = 'output window, operand 0']
    %11 = vsyncpa [#allocation3], 0
    %s12 = scalar_lea.sflag [#allocation3], 1
    %13 = vsyncpa %s12, 0
    %14 = vsyncpa [#allocation6], 0
    %15 = vsyncpa [#allocation4], 0
    %s16 = scalar_lea.sflag [#allocation4], 1
    %17 = vsyncpa %s16, 0
    loop: start=0, step=1, limit=4
    $region2: #{tpu_custom_call.1} parent=1 // loop_pre_header
      _
    $region3: #{tpu_custom_call.1} parent=1 // loop_header
      %s19 = sphi 0, %s23
      %p20 = scmp.ge.s32.totalorder %s19, 4
      %s29 = sphi 0, %s31
      %s32 = sphi 0, %s29
      %s33 = sphi 0, %s32
      %s49 = sphi 0, %s33
      %s53 = sphi 0, %s53
      %s55 = sphi 0, %s53
      %s56 = sphi 0, %s55
      %s70 = sphi 0, %s56
      %s74 = sphi 0, %s74
      %s76 = sphi 0, %s74
      %s77 = sphi 0, %s76
      %s91 = sphi 0, %s77
      %s95 = sphi 0, %s95
      %s97 = sphi 0, %s95
      %s98 = sphi 0, %s97
      %s112 = sphi 0, %s98
      %s116 = sphi 0, %s116
      %s118 = sphi 0, %s116
      %s119 = sphi 0, %s118
      %s133 = sphi 0, %s119
      %s137 = sphi 0, %s137
      %s139 = sphi 0, %s137
      %s140 = sphi 0, %s139
      %s154 = sphi 0, %s140
      %s160 = sphi 0, %s162
      %s163 = sphi 0, %s160
      %s164 = sphi 0, %s163
      %s180 = sphi 0, %s164
    $region4: #{tpu_custom_call.1} parent=1 // loop_header_branch
      %22 = sbr.rel (%p20) target = $region8
    $region5: #{tpu_custom_call.1} parent=1 // loop_body
      %s24 = ssub.s32 %s19, 1
      %s25 = ssub.s32 %s19, 2
      %s26 = sadd.s32 %s19, 1
      %s27 = ssub.s32 %s19, %s26
      %p28 = scmp.eq.s32.totalorder %s27, 0
      %s30 = sadd.s32 %s29, 1
      %s31 = scalar_select %p28, %s29, %s30
      %p34 = pneg %p28
      %p35 = scmp.eq.s32.totalorder %s19, 1
      %p36 = por %p34, %p35
      %p37 = scmp.ne.s32.totalorder %s29, %s32
      %p38 = scmp.eq.s32.totalorder %s19, 0
      %p39 = por %p37, %p38
      %p40 = scmp.ne.s32.totalorder %s29, %s32
      %p41 = scmp.eq.s32.totalorder %s24, 1
      %p42 = por %p40, %p41
      %p43 = scmp.ne.s32.totalorder %s32, %s33
      %p44 = scmp.eq.s32.totalorder %s24, 0
      %p45 = por %p43, %p44
      %p46 = scmp.ne.s32.totalorder %s32, %s33
      %p47 = scmp.eq.s32.totalorder %s25, 1
      %p48 = por %p46, %p47
      %p50 = scmp.ne.s32.totalorder %s33, %s49
      %p51 = scmp.eq.s32.totalorder %s25, 0
      %p52 = por %p50, %p51
      %s54 = sadd.s32 %s53, 1
      %p57 = scmp.eq.s32.totalorder %s19, 1
      %p58 = scmp.ne.s32.totalorder %s53, %s55
      %p59 = scmp.eq.s32.totalorder %s19, 0
      %p60 = por %p58, %p59
      %p61 = scmp.ne.s32.totalorder %s53, %s55
      %p62 = scmp.eq.s32.totalorder %s24, 1
      %p63 = por %p61, %p62
      %p64 = scmp.ne.s32.totalorder %s55, %s56
      %p65 = scmp.eq.s32.totalorder %s24, 0
      %p66 = por %p64, %p65
      %p67 = scmp.ne.s32.totalorder %s55, %s56
      %p68 = scmp.eq.s32.totalorder %s25, 1
      %p69 = por %p67, %p68
      %p71 = scmp.ne.s32.totalorder %s56, %s70
      %p72 = scmp.eq.s32.totalorder %s25, 0
      %p73 = por %p71, %p72
      %s75 = sadd.s32 %s74, 1
      %p78 = scmp.eq.s32.totalorder %s19, 1
      %p79 = scmp.ne.s32.totalorder %s74, %s76
      %p80 = scmp.eq.s32.totalorder %s19, 0
      %p81 = por %p79, %p80
      %p82 = scmp.ne.s32.totalorder %s74, %s76
      %p83 = scmp.eq.s32.totalorder %s24, 1
      %p84 = por %p82, %p83
      %p85 = scmp.ne.s32.totalorder %s76, %s77
      %p86 = scmp.eq.s32.totalorder %s24, 0
      %p87 = por %p85, %p86
      %p88 = scmp.ne.s32.totalorder %s76, %s77
      %p89 = scmp.eq.s32.totalorder %s25, 1
      %p90 = por %p88, %p89
      %p92 = scmp.ne.s32.totalorder %s77, %s91
      %p93 = scmp.eq.s32.totalorder %s25, 0
      %p94 = por %p92, %p93
      %s96 = sadd.s32 %s95, 1
      %p99 = scmp.eq.s32.totalorder %s19, 1
      %p100 = scmp.ne.s32.totalorder %s95, %s97
      %p101 = scmp.eq.s32.totalorder %s19, 0
      %p102 = por %p100, %p101
      %p103 = scmp.ne.s32.totalorder %s95, %s97
      %p104 = scmp.eq.s32.totalorder %s24, 1
      %p105 = por %p103, %p104
      %p106 = scmp.ne.s32.totalorder %s97, %s98
      %p107 = scmp.eq.s32.totalorder %s24, 0
      %p108 = por %p106, %p107
      %p109 = scmp.ne.s32.totalorder %s97, %s98
      %p110 = scmp.eq.s32.totalorder %s25, 1
      %p111 = por %p109, %p110
      %p113 = scmp.ne.s32.totalorder %s98, %s112
      %p114 = scmp.eq.s32.totalorder %s25, 0
      %p115 = por %p113, %p114
      %s117 = sadd.s32 %s116, 1
      %p120 = scmp.eq.s32.totalorder %s19, 1
      %p121 = scmp.ne.s32.totalorder %s116, %s118
      %p122 = scmp.eq.s32.totalorder %s19, 0
      %p123 = por %p121, %p122
      %p124 = scmp.ne.s32.totalorder %s116, %s118
      %p125 = scmp.eq.s32.totalorder %s24, 1
      %p126 = por %p124, %p125
      %p127 = scmp.ne.s32.totalorder %s118, %s119
      %p128 = scmp.eq.s32.totalorder %s24, 0
      %p129 = por %p127, %p128
      %p130 = scmp.ne.s32.totalorder %s118, %s119
      %p131 = scmp.eq.s32.totalorder %s25, 1
      %p132 = por %p130, %p131
      %p134 = scmp.ne.s32.totalorder %s119, %s133
      %p135 = scmp.eq.s32.totalorder %s25, 0
      %p136 = por %p134, %p135
      %s138 = sadd.s32 %s137, 1
      %p141 = scmp.eq.s32.totalorder %s19, 1
      %p142 = scmp.ne.s32.totalorder %s137, %s139
      %p143 = scmp.eq.s32.totalorder %s19, 0
      %p144 = por %p142, %p143
      %p145 = scmp.ne.s32.totalorder %s137, %s139
      %p146 = scmp.eq.s32.totalorder %s24, 1
      %p147 = por %p145, %p146
      %p148 = scmp.ne.s32.totalorder %s139, %s140
      %p149 = scmp.eq.s32.totalorder %s24, 0
      %p150 = por %p148, %p149
      %p151 = scmp.ne.s32.totalorder %s139, %s140
      %p152 = scmp.eq.s32.totalorder %s25, 1
      %p153 = por %p151, %p152
      %p155 = scmp.ne.s32.totalorder %s140, %s154
      %p156 = scmp.eq.s32.totalorder %s25, 0
      %p157 = por %p155, %p156
      %s158 = ssub.s32 %s19, %s26
      %p159 = scmp.eq.s32.totalorder %s158, 0
      %s161 = sadd.s32 %s160, 1
      %s162 = scalar_select %p159, %s160, %s161
      %p165 = pneg %p159
      %p166 = scmp.eq.s32.totalorder %s19, 1
      %p167 = por %p165, %p166
      %p168 = scmp.ne.s32.totalorder %s160, %s163
      %p169 = scmp.eq.s32.totalorder %s19, 0
      %p170 = por %p168, %p169
      %p171 = scmp.ne.s32.totalorder %s160, %s163
      %p172 = scmp.eq.s32.totalorder %s24, 1
      %p173 = por %p171, %p172
      %p174 = scmp.ne.s32.totalorder %s163, %s164
      %p175 = scmp.eq.s32.totalorder %s24, 0
      %p176 = por %p174, %p175
      %p177 = scmp.ne.s32.totalorder %s163, %s164
      %p178 = scmp.eq.s32.totalorder %s25, 1
      %p179 = por %p177, %p178
      %p181 = scmp.ne.s32.totalorder %s164, %s180
      %p182 = scmp.eq.s32.totalorder %s25, 0
      %p183 = por %p181, %p182
      %p184 = scmp.le.s32.totalorder 1, %s19
      %p185 = scmp.lt.s32.totalorder %s19, 3
      %p186 = pnand %p184, %p185
      %p187 = pneg %p186
      // Predicated region
      $region9: #{tpu_custom_call.1} parent=5 // pred_check
        _
      $region10: #{tpu_custom_call.1} parent=5 // pred_check_branch
        %189 = sbr.rel (%p186) target = $region12
      $region11: #{tpu_custom_call.1} parent=5 // pred_region
        %s190 = ssub.s32 %s19, 1
        // Predicated region
        $region13: #{tpu_custom_call.1} parent=11 // pred_check
          %p191 = pneg %p66
        $region14: #{tpu_custom_call.1} parent=11 // pred_check_branch
          %193 = sbr.rel (%p191) target = $region16
        $region15: #{tpu_custom_call.1} parent=11 // pred_region
          _
        $region16: #{tpu_custom_call.1} parent=11 // pred_fallthru
          _
        // Predicated region
        $region17: #{tpu_custom_call.1} parent=11 // pred_check
          %p194 = pneg %p87
        $region18: #{tpu_custom_call.1} parent=11 // pred_check_branch
          %196 = sbr.rel (%p194) target = $region20
        $region19: #{tpu_custom_call.1} parent=11 // pred_region
          _
        $region20: #{tpu_custom_call.1} parent=11 // pred_fallthru
          _
        // Predicated region
        $region21: #{tpu_custom_call.1} parent=11 // pred_check
          %p197 = pneg %p108
        $region22: #{tpu_custom_call.1} parent=11 // pred_check_branch
          %199 = sbr.rel (%p197) target = $region24
        $region23: #{tpu_custom_call.1} parent=11 // pred_region
          _
        $region24: #{tpu_custom_call.1} parent=11 // pred_fallthru
          _
        // Predicated region
        $region25: #{tpu_custom_call.1} parent=11 // pred_check
          %p200 = pneg %p129
        $region26: #{tpu_custom_call.1} parent=11 // pred_check_branch
          %202 = sbr.rel (%p200) target = $region28
        $region27: #{tpu_custom_call.1} parent=11 // pred_region
          %s204 = ssub.s32 512, 512
          %205 = vsyncadd [#allocation6], %s204
          %s206 = sshll.u32 [#allocation5], 4
          %s207 = int_to_ptr.vmem [resolvable:$true] %s206
          %212 = dma.hbm_to_vmem [thread:$0]  %s4, 512, %s207, [#allocation6], 256, 256, 16
        $region28: #{tpu_custom_call.1} parent=11 // pred_fallthru
          _
        // Predicated region
        $region29: #{tpu_custom_call.1} parent=11 // pred_check
          %p213 = pneg %p150
        $region30: #{tpu_custom_call.1} parent=11 // pred_check_branch
          %215 = sbr.rel (%p213) target = $region32
        $region31: #{tpu_custom_call.1} parent=11 // pred_region
          _
        $region32: #{tpu_custom_call.1} parent=11 // pred_fallthru
          _
      $region12: #{tpu_custom_call.1} parent=5 // pred_fallthru
        _
      %p216 = scmp.lt.s32.totalorder %s19, 2
      // Predicated region
      $region33: #{tpu_custom_call.1} parent=5 // pred_check
        %p217 = pneg %p216
      $region34: #{tpu_custom_call.1} parent=5 // pred_check_branch
        %219 = sbr.rel (%p217) target = $region36
      $region35: #{tpu_custom_call.1} parent=5 // pred_region
        // Predicated region
        $region37: #{tpu_custom_call.1} parent=35 // pred_check
          %p220 = pneg %p39
        $region38: #{tpu_custom_call.1} parent=35 // pred_check_branch
          %222 = sbr.rel (%p220) target = $region40
        $region39: #{tpu_custom_call.1} parent=35 // pred_region
          %s223 = sand.u32 %s29, 1
          %s224 = scalar_lea.sflag [#allocation3], %s223
          %s225 = sand.u32 %s29, 1
          %s226 = smul.addr %s225, 48
          %s227 = scalar_lea.vmem [#allocation2], %s226
          %s228 = smul.u32 3, %s19
          %s230 = ssub.s32 768, 768
          %231 = vsyncadd %s224, %s230
          %s232 = smul.addr %s228, 128
          %s233 = scalar_lea.hbm %s0, %s232
          %s234 = sshll.u32 %s227, 4
          %s235 = int_to_ptr.vmem [resolvable:$true] %s234
          %240 = dma.hbm_to_vmem [thread:$0]  %s233, 768, %s235, %s224, 768, 384, 24
        $region40: #{tpu_custom_call.1} parent=35 // pred_fallthru
          _
      $region36: #{tpu_custom_call.1} parent=5 // pred_fallthru
        _
      %p241 = scmp.le.s32.totalorder 1, %s19
      %p242 = scmp.lt.s32.totalorder %s19, 3
      %p243 = pnand %p241, %p242
      %p244 = pneg %p243
      // Predicated region
      $region41: #{tpu_custom_call.1} parent=5 // pred_check
        _
      $region42: #{tpu_custom_call.1} parent=5 // pred_check_branch
        %246 = sbr.rel (%p243) target = $region44
      $region43: #{tpu_custom_call.1} parent=5 // pred_region
        %s247 = ssub.s32 %s19, 1
        %s248 = sand.u32 %s32, 1
        %s249 = scalar_lea.sflag [#allocation3], %s248
        %s250 = sand.u32 %s32, 1
        %s251 = smul.addr %s250, 48
        %s252 = scalar_lea.vmem [#allocation2], %s251
        // Predicated region
        $region45: #{tpu_custom_call.1} parent=43 // pred_check
          %p253 = pneg %p45
        $region46: #{tpu_custom_call.1} parent=43 // pred_check_branch
          %255 = sbr.rel (%p253) target = $region48
        $region47: #{tpu_custom_call.1} parent=43 // pred_region
          %256 = dma.done %s249, 768
        $region48: #{tpu_custom_call.1} parent=43 // pred_fallthru
          _
        // Predicated region
        $region49: #{tpu_custom_call.1} parent=43 // pred_check
          %p257 = pneg %p129
        $region50: #{tpu_custom_call.1} parent=43 // pred_check_branch
          %259 = sbr.rel (%p257) target = $region52
        $region51: #{tpu_custom_call.1} parent=43 // pred_region
          %260 = dma.done [#allocation6], 512
        $region52: #{tpu_custom_call.1} parent=43 // pred_fallthru
          _
        %s261 = sand.u32 %s32, 1
        %s262 = scalar_lea.sflag [#allocation3], %s261
        %s263 = sand.u32 %s32, 1
        %s264 = smul.addr %s263, 48
        %s265 = scalar_lea.vmem [#allocation2], %s264
        %p266 = pneg %p45
        %p267 = pneg %p42
        %p268 = pneg %p66
        %p269 = pneg %p63
        %p270 = pneg %p87
        %p271 = pneg %p84
        %p272 = pneg %p108
        %p273 = pneg %p105
        %p274 = pneg %p129
        %p275 = pneg %p126
        %p276 = pneg %p150
        %p277 = pneg %p147
        %p278 = pneg %p176
        %p279 = pneg %p173
        %s280 = sand.u32 %s163, 1
        %s281 = scalar_lea.sflag [#allocation4], %s280
        %s282 = sand.u32 %s163, 1
        %s283 = smul.addr %s282, 48
        %s284 = scalar_lea.vmem [#allocation7], %s283
        %s285 = smul.u32 3, %s24
        %s286 = smul.u32 3, %s24
        %v287 = vld [vmem:[%s252] sm:$0xff]
        %v288 = vld [vmem:[%s252 + $0x8] sm:$0xff]
        %v289 = vld [vmem:[%s252 + $0x10] sm:$0xff]
        %v290 = vld [vmem:[%s252 + $0x18] sm:$0xff]
        %v291 = vld [vmem:[%s252 + $0x20] sm:$0xff]
        %v292 = vld [vmem:[%s252 + $0x28] sm:$0xff]
        %v293 = vld [vmem:[%s1] sm:$0x7]
        %294 = vrot.lane.b32.xlu0 %v287, 19
        %v295 = vpop.permute.xlu0 %294
        %296 = vrot.lane.b32.xlu0 %v290, 19
        %v297 = vpop.permute.xlu0 %296
        %298 = vrot.lane.b32.xlu0 %v288, 19
        %v299 = vpop.permute.xlu0 %298
        %300 = vrot.lane.b32.xlu0 %v291, 19
        %v301 = vpop.permute.xlu0 %300
        %302 = vrot.lane.b32.xlu0 %v289, 19
        %v303 = vpop.permute.xlu0 %302
        %304 = vrot.lane.b32.xlu0 %v292, 19
        %v305 = vpop.permute.xlu0 %304
        %v306 = vlaneseq
        %v307 = vand.u32 %v306, 127
        %vm308 = vcmp.lt.s32.totalorder %v307, 19
        %v309 = vsel %vm308, %v299, %v303
        %v310 = vsel %vm308, %v301, %v305
        %v311 = vsel %vm308, %v295, %v299
        %v312 = vsel %vm308, %v297, %v301
        %v313 = vsel %vm308, %v303, %v295
        %v314 = vsel %vm308, %v305, %v297
        %315 = vrot.lane.b32.xlu0 %v287, 18
        %v316 = vpop.permute.xlu0 %315
        %317 = vrot.lane.b32.xlu0 %v290, 18
        %v318 = vpop.permute.xlu0 %317
        %319 = vrot.lane.b32.xlu0 %v288, 18
        %v320 = vpop.permute.xlu0 %319
        %321 = vrot.lane.b32.xlu0 %v291, 18
        %v322 = vpop.permute.xlu0 %321
        %323 = vrot.lane.b32.xlu0 %v289, 18
        %v324 = vpop.permute.xlu0 %323
        %325 = vrot.lane.b32.xlu0 %v292, 18
        %v326 = vpop.permute.xlu0 %325
        %vm327 = vcmp.lt.s32.totalorder %v307, 18
        %v328 = vsel %vm327, %v320, %v324
        %v329 = vsel %vm327, %v322, %v326
        %v330 = vsel %vm327, %v316, %v320
        %v331 = vsel %vm327, %v318, %v322
        %v332 = vsel %vm327, %v324, %v316
        %v333 = vsel %vm327, %v326, %v318
        %334 = vrot.lane.b32.xlu0 %v287, 17
        %v335 = vpop.permute.xlu0 %334
        %336 = vrot.lane.b32.xlu0 %v290, 17
        %v337 = vpop.permute.xlu0 %336
        %338 = vrot.lane.b32.xlu0 %v288, 17
        %v339 = vpop.permute.xlu0 %338
        %340 = vrot.lane.b32.xlu0 %v291, 17
        %v341 = vpop.permute.xlu0 %340
        %342 = vrot.lane.b32.xlu0 %v289, 17
        %v343 = vpop.permute.xlu0 %342
        %344 = vrot.lane.b32.xlu0 %v292, 17
        %v345 = vpop.permute.xlu0 %344
        %vm346 = vcmp.lt.s32.totalorder %v307, 17
        %v347 = vsel %vm346, %v339, %v343
        %v348 = vsel %vm346, %v341, %v345
        %v349 = vsel %vm346, %v335, %v339
        %v350 = vsel %vm346, %v337, %v341
        %v351 = vsel %vm346, %v343, %v335
        %v352 = vsel %vm346, %v345, %v337
        %353 = vrot.lane.b32.xlu0 %v287, 1
        %v354 = vpop.permute.xlu0 %353
        %355 = vrot.lane.b32.xlu0 %v290, 1
        %v356 = vpop.permute.xlu0 %355
        %357 = vrot.lane.b32.xlu0 %v288, 1
        %v358 = vpop.permute.xlu0 %357
        %359 = vrot.lane.b32.xlu0 %v291, 1
        %v360 = vpop.permute.xlu0 %359
        %361 = vrot.lane.b32.xlu0 %v289, 1
        %v362 = vpop.permute.xlu0 %361
        %363 = vrot.lane.b32.xlu0 %v292, 1
        %v364 = vpop.permute.xlu0 %363
        %vm365 = vcmp.lt.s32.totalorder %v307, 1
        %v366 = vsel %vm365, %v358, %v362
        %v367 = vsel %vm365, %v360, %v364
        %v368 = vsel %vm365, %v354, %v358
        %v369 = vsel %vm365, %v356, %v360
        %v370 = vsel %vm365, %v362, %v354
        %v371 = vsel %vm365, %v364, %v356
        %372 = vrot.lane.b32.xlu0 %v287, 127
        %v373 = vpop.permute.xlu0 %372
        %374 = vrot.lane.b32.xlu0 %v290, 127
        %v375 = vpop.permute.xlu0 %374
        %376 = vrot.lane.b32.xlu0 %v288, 127
        %v377 = vpop.permute.xlu0 %376
        %378 = vrot.lane.b32.xlu0 %v291, 127
        %v379 = vpop.permute.xlu0 %378
        %380 = vrot.lane.b32.xlu0 %v289, 127
        %v381 = vpop.permute.xlu0 %380
        %382 = vrot.lane.b32.xlu0 %v292, 127
        %v383 = vpop.permute.xlu0 %382
        %vm384 = vcmp.lt.s32.totalorder %v307, 127
        %v385 = vsel %vm384, %v377, %v381
        %v386 = vsel %vm384, %v379, %v383
        %v387 = vsel %vm384, %v373, %v377
        %v388 = vsel %vm384, %v375, %v379
        %v389 = vsel %vm384, %v381, %v373
        %v390 = vsel %vm384, %v383, %v375
        %391 = vrot.lane.b32.xlu0 %v287, 111
        %v392 = vpop.permute.xlu0 %391
        %393 = vrot.lane.b32.xlu0 %v290, 111
        %v394 = vpop.permute.xlu0 %393
        %395 = vrot.lane.b32.xlu0 %v288, 111
        %v396 = vpop.permute.xlu0 %395
        %397 = vrot.lane.b32.xlu0 %v291, 111
        %v398 = vpop.permute.xlu0 %397
        %399 = vrot.lane.b32.xlu0 %v289, 111
        %v400 = vpop.permute.xlu0 %399
        %401 = vrot.lane.b32.xlu0 %v292, 111
        %v402 = vpop.permute.xlu0 %401
        %vm403 = vcmp.lt.s32.totalorder %v307, 111
        %v404 = vsel %vm403, %v396, %v400
        %v405 = vsel %vm403, %v398, %v402
        %v406 = vsel %vm403, %v392, %v396
        %v407 = vsel %vm403, %v394, %v398
        %v408 = vsel %vm403, %v400, %v392
        %v409 = vsel %vm403, %v402, %v394
        %410 = vrot.lane.b32.xlu0 %v287, 110
        %v411 = vpop.permute.xlu0 %410
        %412 = vrot.lane.b32.xlu0 %v290, 110
        %v413 = vpop.permute.xlu0 %412
        %414 = vrot.lane.b32.xlu0 %v288, 110
        %v415 = vpop.permute.xlu0 %414
        %416 = vrot.lane.b32.xlu0 %v291, 110
        %v417 = vpop.permute.xlu0 %416
        %418 = vrot.lane.b32.xlu0 %v289, 110
        %v419 = vpop.permute.xlu0 %418
        %420 = vrot.lane.b32.xlu0 %v292, 110
        %v421 = vpop.permute.xlu0 %420
        %vm422 = vcmp.lt.s32.totalorder %v307, 110
        %v423 = vsel %vm422, %v415, %v419
        %v424 = vsel %vm422, %v417, %v421
        %v425 = vsel %vm422, %v411, %v415
        %v426 = vsel %vm422, %v413, %v417
        %v427 = vsel %vm422, %v419, %v411
        %v428 = vsel %vm422, %v421, %v413
        %429 = vrot.lane.b32.xlu0 %v287, 109
        %v430 = vpop.permute.xlu0 %429
        %431 = vrot.lane.b32.xlu0 %v290, 109
        %v432 = vpop.permute.xlu0 %431
        %433 = vrot.lane.b32.xlu0 %v288, 109
        %v434 = vpop.permute.xlu0 %433
        %435 = vrot.lane.b32.xlu0 %v291, 109
        %v436 = vpop.permute.xlu0 %435
        %437 = vrot.lane.b32.xlu0 %v289, 109
        %v438 = vpop.permute.xlu0 %437
        %439 = vrot.lane.b32.xlu0 %v292, 109
        %v440 = vpop.permute.xlu0 %439
        %vm441 = vcmp.lt.s32.totalorder %v307, 109
        %v442 = vsel %vm441, %v434, %v438
        %v443 = vsel %vm441, %v436, %v440
        %v444 = vsel %vm441, %v430, %v434
        %v445 = vsel %vm441, %v432, %v436
        %v446 = vsel %vm441, %v438, %v430
        %v447 = vsel %vm441, %v440, %v432
        %v448 = vld [vmem:[%s2] sm:$0xff]
        %v449 = vld [vmem:[%s2 + $0x8] sm:$0xff]
        %v450 = vld [vmem:[%s2 + $0x10] sm:$0xff]
        %v451 = vld [vmem:[%s2 + $0x18] sm:$0xff]
        %v452 = vld [vmem:[%s3] sm:$0xff]
        %v453 = vld [vmem:[%s3 + $0x8] sm:$0xff]
        %455 = vset.pattern.permute.xlu0 0
        %456 = vperm.xlu0 %455, %v452
        %v457 = vpop.permute.xlu0 %456
        %460 = vset.pattern.permute.xlu0 0
        %461 = vperm.xlu0 %460, %v453
        %v462 = vpop.permute.xlu0 %461
        %vm464 = vcmask 130048
        %v466 = vsel %vm464, %v449, 0
        %v469 = vsel %vm464, %v451, 0
        %471 = vmatprep.subr.mxu0 %v311
        %472 = vmatpush1.msra.mxu0 %v313
        %473 = vmatprep.subr.mxu0 %v312
        %474 = vmatpush1.msra.mxu0 %v314
        %475 = vmatprep.subr.mxu0 %v330
        %476 = vmatpush1.msra.mxu0 %v332
        %477 = vmatprep.subr.mxu0 %v331
        %478 = vmatpush1.msra.mxu0 %v333
        %479 = vmatprep.subr.mxu0 %v349
        %480 = vmatpush1.msra.mxu0 %v351
        %481 = vmatprep.subr.mxu0 %v350
        %482 = vmatpush1.msra.mxu0 %v352
        %483 = vmatprep.subr.mxu0 %v368
        %484 = vmatpush1.msra.mxu0 %v370
        %485 = vmatprep.subr.mxu0 %v369
        %486 = vmatpush1.msra.mxu0 %v371
        %487 = vmatprep.subr.mxu0 %v288
        %488 = vmatpush1.msra.mxu0 %v287
        %489 = vmatprep.subr.mxu0 %v291
        %490 = vmatpush1.msra.mxu0 %v290
        %491 = vmatprep.subr.mxu0 %v385
        %492 = vmatpush1.msra.mxu0 %v387
        %493 = vmatprep.subr.mxu0 %v386
        %494 = vmatpush1.msra.mxu0 %v388
        %495 = vmatprep.subr.mxu0 %v404
        %496 = vmatpush1.msra.mxu0 %v406
        %497 = vmatprep.subr.mxu0 %v405
        %498 = vmatpush1.msra.mxu0 %v407
        %499 = vmatprep.subr.mxu0 %v423
        %500 = vmatpush1.msra.mxu0 %v425
        %501 = vmatprep.subr.mxu0 %v424
        %502 = vmatpush1.msra.mxu0 %v426
        %503 = vmatprep.subr.mxu0 %v442
        %504 = vmatpush1.msra.mxu0 %v444
        %505 = vmatprep.subr.mxu0 %v443
        %506 = vmatpush1.msra.mxu0 %v445
        %507 = vmatprep.subr.mxu0 0.0
        %508 = vmatpush1.msra.mxu0 0.0
        %509 = vmatprep.subr.mxu0 0.0
        %510 = vmatpush1.msra.mxu0 0.0
        %511 = vmatprep.subr.mxu0 0.0
        %512 = vmatpush1.msra.mxu0 0.0
        %513 = vmatprep.subr.mxu0 0.0
        %514 = vmatpush1.msra.mxu0 0.0
        %515 = vmatprep.subr.mxu0 0.0
        %516 = vmatpush1.msra.mxu0 0.0
        %517 = vmatprep.subr.mxu0 0.0
        %518 = vmatpush1.msra.mxu0 0.0
        %519 = vmatprep.subr.mxu0 0.0
        %520 = vmatpush1.msra.mxu0 0.0
        %521 = vmatprep.subr.mxu0 0.0
        %522 = vmatpush1.msra.mxu0 0.0
        %523 = vmatprep.subr.mxu0 0.0
        %524 = vmatpush1.msra.mxu0 0.0
        %525 = vmatprep.subr.mxu0 0.0
        %526 = vmatpush1.msra.mxu0 0.0
        %527 = vmatprep.subr.mxu0 0.0
        %528 = vmatpush1.msra.mxu0 0.0
        %529 = vmatprep.subr.mxu0 0.0
        %530 = vmatpush1.msra.mxu0 0.0
        %531 = vmatprep.subr.mxu0 0.0
        %532 = vmatpush1.msra.mxu0 0.0
        %533 = vmatprep.subr.mxu0 0.0
        %534 = vmatpush1.msra.mxu0 0.0
        %535 = vmatprep.mubr.f32.mxu0 %v466
        %536 = vmatmul.mubr.f32.gmra.mrb[0].mxu0 %v448
        %v537 = vpop.f32.mrb[0].mxu0
        %v538 = vadd.f32 %v457, %v537
        %v539 = vpop.f32.mrb[0].mxu0
        %v540 = vadd.f32 %v457, %v539
        %541 = vmatprep.mubr.f32.mxu0 %v469
        %542 = vmatmul.mubr.f32.gmra.mrb[0].mxu0 %v450
        %v543 = vpop.f32.mrb[0].mxu0
        %v544 = vadd.f32 %v462, %v543
        %v545 = vpop.f32.mrb[0].mxu0
        %v546 = vadd.f32 %v462, %v545
        %547 = vdwg.mxu0
        %548 = vmatprep.subr.mxu0 0.0
        %549 = vmatpush1.msra.mxu0 %v309
        %550 = vmatprep.subr.mxu0 0.0
        %551 = vmatpush1.msra.mxu0 %v310
        %552 = vmatprep.subr.mxu0 0.0
        %553 = vmatpush1.msra.mxu0 %v328
        %554 = vmatprep.subr.mxu0 0.0
        %555 = vmatpush1.msra.mxu0 %v329
        %556 = vmatprep.subr.mxu0 0.0
        %557 = vmatpush1.msra.mxu0 %v347
        %558 = vmatprep.subr.mxu0 0.0
        %559 = vmatpush1.msra.mxu0 %v348
        %560 = vmatprep.subr.mxu0 0.0
        %561 = vmatpush1.msra.mxu0 %v366
        %562 = vmatprep.subr.mxu0 0.0
        %563 = vmatpush1.msra.mxu0 %v367
        %564 = vmatprep.subr.mxu0 0.0
        %565 = vmatpush1.msra.mxu0 %v289
        %566 = vmatprep.subr.mxu0 0.0
        %567 = vmatpush1.msra.mxu0 %v292
        %568 = vmatprep.subr.mxu0 0.0
        %569 = vmatpush1.msra.mxu0 %v389
        %570 = vmatprep.subr.mxu0 0.0
        %571 = vmatpush1.msra.mxu0 %v390
        %572 = vmatprep.subr.mxu0 0.0
        %573 = vmatpush1.msra.mxu0 %v408
        %574 = vmatprep.subr.mxu0 0.0
        %575 = vmatpush1.msra.mxu0 %v409
        %576 = vmatprep.subr.mxu0 0.0
        %577 = vmatpush1.msra.mxu0 %v427
        %578 = vmatprep.subr.mxu0 0.0
        %579 = vmatpush1.msra.mxu0 %v428
        %580 = vmatprep.subr.mxu0 0.0
        %581 = vmatpush1.msra.mxu0 %v446
        %582 = vmatprep.subr.mxu0 0.0
        %583 = vmatpush1.msra.mxu0 %v447
        %584 = vmatprep.subr.mxu0 0.0
        %585 = vmatpush1.msra.mxu0 0.0
        %586 = vmatprep.subr.mxu0 0.0
        %587 = vmatpush1.msra.mxu0 0.0
        %588 = vmatprep.subr.mxu0 0.0
        %589 = vmatpush1.msra.mxu0 0.0
        %590 = vmatprep.subr.mxu0 0.0
        %591 = vmatpush1.msra.mxu0 0.0
        %592 = vmatprep.subr.mxu0 0.0
        %593 = vmatpush1.msra.mxu0 0.0
        %594 = vmatprep.subr.mxu0 0.0
        %595 = vmatpush1.msra.mxu0 0.0
        %596 = vmatprep.subr.mxu0 0.0
        %597 = vmatpush1.msra.mxu0 0.0
        %598 = vmatprep.subr.mxu0 0.0
        %599 = vmatpush1.msra.mxu0 0.0
        %600 = vmatprep.subr.mxu0 0.0
        %601 = vmatpush1.msra.mxu0 0.0
        %602 = vmatprep.subr.mxu0 0.0
        %603 = vmatpush1.msra.mxu0 0.0
        %604 = vmatprep.subr.mxu0 0.0
        %605 = vmatpush1.msra.mxu0 0.0
        %606 = vmatprep.subr.mxu0 0.0
        %607 = vmatpush1.msra.mxu0 0.0
        %608 = vmatprep.subr.mxu0 0.0
        %609 = vmatpush1.msra.mxu0 0.0
        %610 = vmatprep.subr.mxu0 0.0
        %611 = vmatpush1.msra.mxu0 0.0
        %612 = vmatprep.mubr.f32.mxu0 %v466
        %613 = vmatmul.mubr.f32.gmra.mrb[0].mxu0 %v448
        %v614 = vpop.f32.mrb[0].mxu0
        %v615 = vadd.f32 %v457, %v614
        %v616 = vpop.f32.mrb[0].mxu0
        %617 = vmatprep.mubr.f32.mxu0 %v469
        %618 = vmatmul.mubr.f32.gmra.mrb[0].mxu0 %v450
        %v619 = vpop.f32.mrb[0].mxu0
        %v620 = vadd.f32 %v462, %v619
        %v621 = vpop.f32.mrb[0].mxu0
        %622 = vdwg.mxu0
        %v623 = vmax.f32 %v538, 0.0
        %v624 = vmax.f32 %v540, 0.0
        %v625 = vmax.f32 %v615, 0.0
        %v626 = vmax.f32 %v544, 0.0
        %v627 = vmax.f32 %v546, 0.0
        %v628 = vmax.f32 %v620, 0.0
        %v630 = vlaneseq
        %v631 = vshrl.u32 %v630, 7
        %v632 = vsub.s32 0, %v631
        %v633 = vrot.slane %v293, %v632
        %v634 = vlaneseq
        %v635 = vshrl.u32 %v634, 7
        %v636 = vsub.s32 1, %v635
        %v637 = vrot.slane %v293, %v636
        %v638 = vlaneseq
        %v639 = vshrl.u32 %v638, 7
        %v640 = vsub.s32 2, %v639
        %v641 = vrot.slane %v293, %v640
        %v645 = vmul.f32 %v623, %v633
        %v646 = vmul.f32 %v624, %v637
        %v647 = vmul.f32 %v625, %v641
        %v648 = vmul.f32 %v626, %v633
        %v649 = vmul.f32 %v627, %v637
        %v650 = vmul.f32 %v628, %v641
        %651 = vrot.lane.b32.xlu0 %v645, 19
        %v652 = vpop.permute.xlu0 %651
        %653 = vrot.lane.b32.xlu0 %v648, 19
        %v654 = vpop.permute.xlu0 %653
        %655 = vrot.lane.b32.xlu0 %v646, 19
        %v656 = vpop.permute.xlu0 %655
        %657 = vrot.lane.b32.xlu0 %v649, 19
        %v658 = vpop.permute.xlu0 %657
        %659 = vrot.lane.b32.xlu0 %v647, 19
        %v660 = vpop.permute.xlu0 %659
        %661 = vrot.lane.b32.xlu0 %v650, 19
        %v662 = vpop.permute.xlu0 %661
        %v663 = vsel %vm308, %v656, %v660
        %v664 = vsel %vm308, %v658, %v662
        %v665 = vsel %vm308, %v652, %v656
        %v666 = vsel %vm308, %v654, %v658
        %v667 = vsel %vm308, %v660, %v652
        %v668 = vsel %vm308, %v662, %v654
        %669 = vrot.lane.b32.xlu0 %v645, 18
        %v670 = vpop.permute.xlu0 %669
        %671 = vrot.lane.b32.xlu0 %v648, 18
        %v672 = vpop.permute.xlu0 %671
        %673 = vrot.lane.b32.xlu0 %v646, 18
        %v674 = vpop.permute.xlu0 %673
        %675 = vrot.lane.b32.xlu0 %v649, 18
        %v676 = vpop.permute.xlu0 %675
        %677 = vrot.lane.b32.xlu0 %v647, 18
        %v678 = vpop.permute.xlu0 %677
        %679 = vrot.lane.b32.xlu0 %v650, 18
        %v680 = vpop.permute.xlu0 %679
        %v681 = vsel %vm327, %v674, %v678
        %v682 = vsel %vm327, %v676, %v680
        %v683 = vsel %vm327, %v670, %v674
        %v684 = vsel %vm327, %v672, %v676
        %v685 = vsel %vm327, %v678, %v670
        %v686 = vsel %vm327, %v680, %v672
        %687 = vrot.lane.b32.xlu0 %v645, 17
        %v688 = vpop.permute.xlu0 %687
        %689 = vrot.lane.b32.xlu0 %v648, 17
        %v690 = vpop.permute.xlu0 %689
        %691 = vrot.lane.b32.xlu0 %v646, 17
        %v692 = vpop.permute.xlu0 %691
        %693 = vrot.lane.b32.xlu0 %v649, 17
        %v694 = vpop.permute.xlu0 %693
        %695 = vrot.lane.b32.xlu0 %v647, 17
        %v696 = vpop.permute.xlu0 %695
        %697 = vrot.lane.b32.xlu0 %v650, 17
        %v698 = vpop.permute.xlu0 %697
        %v699 = vsel %vm346, %v692, %v696
        %v700 = vsel %vm346, %v694, %v698
        %v701 = vsel %vm346, %v688, %v692
        %v702 = vsel %vm346, %v690, %v694
        %v703 = vsel %vm346, %v696, %v688
        %v704 = vsel %vm346, %v698, %v690
        %705 = vrot.lane.b32.xlu0 %v645, 1
        %v706 = vpop.permute.xlu0 %705
        %707 = vrot.lane.b32.xlu0 %v648, 1
        %v708 = vpop.permute.xlu0 %707
        %709 = vrot.lane.b32.xlu0 %v646, 1
        %v710 = vpop.permute.xlu0 %709
        %711 = vrot.lane.b32.xlu0 %v649, 1
        %v712 = vpop.permute.xlu0 %711
        %713 = vrot.lane.b32.xlu0 %v647, 1
        %v714 = vpop.permute.xlu0 %713
        %715 = vrot.lane.b32.xlu0 %v650, 1
        %v716 = vpop.permute.xlu0 %715
        %v717 = vsel %vm365, %v710, %v714
        %v718 = vsel %vm365, %v712, %v716
        %v719 = vsel %vm365, %v706, %v710
        %v720 = vsel %vm365, %v708, %v712
        %v721 = vsel %vm365, %v714, %v706
        %v722 = vsel %vm365, %v716, %v708
        %723 = vrot.lane.b32.xlu0 %v645, 127
        %v724 = vpop.permute.xlu0 %723
        %725 = vrot.lane.b32.xlu0 %v648, 127
        %v726 = vpop.permute.xlu0 %725
        %727 = vrot.lane.b32.xlu0 %v646, 127
        %v728 = vpop.permute.xlu0 %727
        %729 = vrot.lane.b32.xlu0 %v649, 127
        %v730 = vpop.permute.xlu0 %729
        %731 = vrot.lane.b32.xlu0 %v647, 127
        %v732 = vpop.permute.xlu0 %731
        %733 = vrot.lane.b32.xlu0 %v650, 127
        %v734 = vpop.permute.xlu0 %733
        %v735 = vsel %vm384, %v728, %v732
        %v736 = vsel %vm384, %v730, %v734
        %v737 = vsel %vm384, %v724, %v728
        %v738 = vsel %vm384, %v726, %v730
        %v739 = vsel %vm384, %v732, %v724
        %v740 = vsel %vm384, %v734, %v726
        %741 = vrot.lane.b32.xlu0 %v645, 111
        %v742 = vpop.permute.xlu0 %741
        %743 = vrot.lane.b32.xlu0 %v648, 111
        %v744 = vpop.permute.xlu0 %743
        %745 = vrot.lane.b32.xlu0 %v646, 111
        %v746 = vpop.permute.xlu0 %745
        %747 = vrot.lane.b32.xlu0 %v649, 111
        %v748 = vpop.permute.xlu0 %747
        %749 = vrot.lane.b32.xlu0 %v647, 111
        %v750 = vpop.permute.xlu0 %749
        %751 = vrot.lane.b32.xlu0 %v650, 111
        %v752 = vpop.permute.xlu0 %751
        %v753 = vsel %vm403, %v746, %v750
        %v754 = vsel %vm403, %v748, %v752
        %v755 = vsel %vm403, %v742, %v746
        %v756 = vsel %vm403, %v744, %v748
        %v757 = vsel %vm403, %v750, %v742
        %v758 = vsel %vm403, %v752, %v744
        %759 = vrot.lane.b32.xlu0 %v645, 110
        %v760 = vpop.permute.xlu0 %759
        %761 = vrot.lane.b32.xlu0 %v648, 110
        %v762 = vpop.permute.xlu0 %761
        %763 = vrot.lane.b32.xlu0 %v646, 110
        %v764 = vpop.permute.xlu0 %763
        %765 = vrot.lane.b32.xlu0 %v649, 110
        %v766 = vpop.permute.xlu0 %765
        %767 = vrot.lane.b32.xlu0 %v647, 110
        %v768 = vpop.permute.xlu0 %767
        %769 = vrot.lane.b32.xlu0 %v650, 110
        %v770 = vpop.permute.xlu0 %769
        %v771 = vsel %vm422, %v764, %v768
        %v772 = vsel %vm422, %v766, %v770
        %v773 = vsel %vm422, %v760, %v764
        %v774 = vsel %vm422, %v762, %v766
        %v775 = vsel %vm422, %v768, %v760
        %v776 = vsel %vm422, %v770, %v762
        %777 = vrot.lane.b32.xlu0 %v645, 109
        %v778 = vpop.permute.xlu0 %777
        %779 = vrot.lane.b32.xlu0 %v648, 109
        %v780 = vpop.permute.xlu0 %779
        %781 = vrot.lane.b32.xlu0 %v646, 109
        %v782 = vpop.permute.xlu0 %781
        %783 = vrot.lane.b32.xlu0 %v649, 109
        %v784 = vpop.permute.xlu0 %783
        %785 = vrot.lane.b32.xlu0 %v647, 109
        %v786 = vpop.permute.xlu0 %785
        %787 = vrot.lane.b32.xlu0 %v650, 109
        %v788 = vpop.permute.xlu0 %787
        %v789 = vsel %vm441, %v782, %v786
        %v790 = vsel %vm441, %v784, %v788
        %v791 = vsel %vm441, %v778, %v782
        %v792 = vsel %vm441, %v780, %v784
        %v793 = vsel %vm441, %v786, %v778
        %v794 = vsel %vm441, %v788, %v780
        %v795 = vld [vmem:[#allocation5] sm:$0xff]
        %v796 = vld [vmem:[#allocation5 + $0x8] sm:$0xff]
        %v797 = vld [vmem:[#allocation5 + $0x10] sm:$0xff]
        %v798 = vld [vmem:[#allocation5 + $0x18] sm:$0xff]
        %v799 = vld [vmem:[%s5] sm:$0xff]
        %v800 = vld [vmem:[%s5 + $0x8] sm:$0xff]
        %802 = vset.pattern.permute.xlu0 0
        %803 = vperm.xlu0 %802, %v799
        %v804 = vpop.permute.xlu0 %803
        %807 = vset.pattern.permute.xlu0 0
        %808 = vperm.xlu0 %807, %v800
        %v809 = vpop.permute.xlu0 %808
        %v812 = vsel %vm464, %v796, 0
        %v815 = vsel %vm464, %v798, 0
        %817 = vmatprep.subr.mxu0 %v665
        %818 = vmatpush1.msra.mxu0 %v667
        %819 = vmatprep.subr.mxu0 %v666
        %820 = vmatpush1.msra.mxu0 %v668
        %821 = vmatprep.subr.mxu0 %v683
        %822 = vmatpush1.msra.mxu0 %v685
        %823 = vmatprep.subr.mxu0 %v684
        %824 = vmatpush1.msra.mxu0 %v686
        %825 = vmatprep.subr.mxu0 %v701
        %826 = vmatpush1.msra.mxu0 %v703
        %827 = vmatprep.subr.mxu0 %v702
        %828 = vmatpush1.msra.mxu0 %v704
        %829 = vmatprep.subr.mxu0 %v719
        %830 = vmatpush1.msra.mxu0 %v721
        %831 = vmatprep.subr.mxu0 %v720
        %832 = vmatpush1.msra.mxu0 %v722
        %833 = vmatprep.subr.mxu0 %v646
        %834 = vmatpush1.msra.mxu0 %v645
        %835 = vmatprep.subr.mxu0 %v649
        %836 = vmatpush1.msra.mxu0 %v648
        %837 = vmatprep.subr.mxu0 %v735
        %838 = vmatpush1.msra.mxu0 %v737
        %839 = vmatprep.subr.mxu0 %v736
        %840 = vmatpush1.msra.mxu0 %v738
        %841 = vmatprep.subr.mxu0 %v753
        %842 = vmatpush1.msra.mxu0 %v755
        %843 = vmatprep.subr.mxu0 %v754
        %844 = vmatpush1.msra.mxu0 %v756
        %845 = vmatprep.subr.mxu0 %v771
        %846 = vmatpush1.msra.mxu0 %v773
        %847 = vmatprep.subr.mxu0 %v772
        %848 = vmatpush1.msra.mxu0 %v774
        %849 = vmatprep.subr.mxu0 %v789
        %850 = vmatpush1.msra.mxu0 %v791
        %851 = vmatprep.subr.mxu0 %v790
        %852 = vmatpush1.msra.mxu0 %v792
        %853 = vmatprep.subr.mxu0 0.0
        %854 = vmatpush1.msra.mxu0 0.0
        %855 = vmatprep.subr.mxu0 0.0
        %856 = vmatpush1.msra.mxu0 0.0
        %857 = vmatprep.subr.mxu0 0.0
        %858 = vmatpush1.msra.mxu0 0.0
        %859 = vmatprep.subr.mxu0 0.0
        %860 = vmatpush1.msra.mxu0 0.0
        %861 = vmatprep.subr.mxu0 0.0
        %862 = vmatpush1.msra.mxu0 0.0
        %863 = vmatprep.subr.mxu0 0.0
        %864 = vmatpush1.msra.mxu0 0.0
        %865 = vmatprep.subr.mxu0 0.0
        %866 = vmatpush1.msra.mxu0 0.0
        %867 = vmatprep.subr.mxu0 0.0
        %868 = vmatpush1.msra.mxu0 0.0
        %869 = vmatprep.subr.mxu0 0.0
        %870 = vmatpush1.msra.mxu0 0.0
        %871 = vmatprep.subr.mxu0 0.0
        %872 = vmatpush1.msra.mxu0 0.0
        %873 = vmatprep.subr.mxu0 0.0
        %874 = vmatpush1.msra.mxu0 0.0
        %875 = vmatprep.subr.mxu0 0.0
        %876 = vmatpush1.msra.mxu0 0.0
        %877 = vmatprep.subr.mxu0 0.0
        %878 = vmatpush1.msra.mxu0 0.0
        %879 = vmatprep.subr.mxu0 0.0
        %880 = vmatpush1.msra.mxu0 0.0
        %881 = vmatprep.mubr.f32.mxu0 %v812
        %882 = vmatmul.mubr.f32.gmra.mrb[0].mxu0 %v795
        %v883 = vpop.f32.mrb[0].mxu0
        %v884 = vadd.f32 %v804, %v883
        %v885 = vpop.f32.mrb[0].mxu0
        %v886 = vadd.f32 %v804, %v885
        %887 = vmatprep.mubr.f32.mxu0 %v815
        %888 = vmatmul.mubr.f32.gmra.mrb[0].mxu0 %v797
        %v889 = vpop.f32.mrb[0].mxu0
        %v890 = vadd.f32 %v809, %v889
        %v891 = vpop.f32.mrb[0].mxu0
        %v892 = vadd.f32 %v809, %v891
        %893 = vdwg.mxu0
        %894 = vmatprep.subr.mxu0 0.0
        %895 = vmatpush1.msra.mxu0 %v663
        %896 = vmatprep.subr.mxu0 0.0
        %897 = vmatpush1.msra.mxu0 %v664
        %898 = vmatprep.subr.mxu0 0.0
        %899 = vmatpush1.msra.mxu0 %v681
        %900 = vmatprep.subr.mxu0 0.0
        %901 = vmatpush1.msra.mxu0 %v682
        %902 = vmatprep.subr.mxu0 0.0
        %903 = vmatpush1.msra.mxu0 %v699
        %904 = vmatprep.subr.mxu0 0.0
        %905 = vmatpush1.msra.mxu0 %v700
        %906 = vmatprep.subr.mxu0 0.0
        %907 = vmatpush1.msra.mxu0 %v717
        %908 = vmatprep.subr.mxu0 0.0
        %909 = vmatpush1.msra.mxu0 %v718
        %910 = vmatprep.subr.mxu0 0.0
        %911 = vmatpush1.msra.mxu0 %v647
        %912 = vmatprep.subr.mxu0 0.0
        %913 = vmatpush1.msra.mxu0 %v650
        %914 = vmatprep.subr.mxu0 0.0
        %915 = vmatpush1.msra.mxu0 %v739
        %916 = vmatprep.subr.mxu0 0.0
        %917 = vmatpush1.msra.mxu0 %v740
        %918 = vmatprep.subr.mxu0 0.0
        %919 = vmatpush1.msra.mxu0 %v757
        %920 = vmatprep.subr.mxu0 0.0
        %921 = vmatpush1.msra.mxu0 %v758
        %922 = vmatprep.subr.mxu0 0.0
        %923 = vmatpush1.msra.mxu0 %v775
        %924 = vmatprep.subr.mxu0 0.0
        %925 = vmatpush1.msra.mxu0 %v776
        %926 = vmatprep.subr.mxu0 0.0
        %927 = vmatpush1.msra.mxu0 %v793
        %928 = vmatprep.subr.mxu0 0.0
        %929 = vmatpush1.msra.mxu0 %v794
        %930 = vmatprep.subr.mxu0 0.0
        %931 = vmatpush1.msra.mxu0 0.0
        %932 = vmatprep.subr.mxu0 0.0
        %933 = vmatpush1.msra.mxu0 0.0
        %934 = vmatprep.subr.mxu0 0.0
        %935 = vmatpush1.msra.mxu0 0.0
        %936 = vmatprep.subr.mxu0 0.0
        %937 = vmatpush1.msra.mxu0 0.0
        %938 = vmatprep.subr.mxu0 0.0
        %939 = vmatpush1.msra.mxu0 0.0
        %940 = vmatprep.subr.mxu0 0.0
        %941 = vmatpush1.msra.mxu0 0.0
        %942 = vmatprep.subr.mxu0 0.0
        %943 = vmatpush1.msra.mxu0 0.0
        %944 = vmatprep.subr.mxu0 0.0
        %945 = vmatpush1.msra.mxu0 0.0
        %946 = vmatprep.subr.mxu0 0.0
        %947 = vmatpush1.msra.mxu0 0.0
        %948 = vmatprep.subr.mxu0 0.0
        %949 = vmatpush1.msra.mxu0 0.0
        %950 = vmatprep.subr.mxu0 0.0
        %951 = vmatpush1.msra.mxu0 0.0
        %952 = vmatprep.subr.mxu0 0.0
        %953 = vmatpush1.msra.mxu0 0.0
        %954 = vmatprep.subr.mxu0 0.0
        %955 = vmatpush1.msra.mxu0 0.0
        %956 = vmatprep.subr.mxu0 0.0
        %957 = vmatpush1.msra.mxu0 0.0
        %958 = vmatprep.mubr.f32.mxu0 %v812
        %959 = vmatmul.mubr.f32.gmra.mrb[0].mxu0 %v795
        %v960 = vpop.f32.mrb[0].mxu0
        %v961 = vadd.f32 %v804, %v960
        %v962 = vpop.f32.mrb[0].mxu0
        %963 = vmatprep.mubr.f32.mxu0 %v815
        %964 = vmatmul.mubr.f32.gmra.mrb[0].mxu0 %v797
        %v965 = vpop.f32.mrb[0].mxu0
        %v966 = vadd.f32 %v809, %v965
        %v967 = vpop.f32.mrb[0].mxu0
        %968 = vdwg.mxu0
        %v969 = vadd.f32 %v884, %v287
        %v970 = vadd.f32 %v886, %v288
        %v971 = vadd.f32 %v961, %v289
        %v972 = vadd.f32 %v890, %v290
        %v973 = vadd.f32 %v892, %v291
        %v974 = vadd.f32 %v966, %v292
        %v975 = vmax.f32 %v969, 0.0
        %v976 = vmax.f32 %v970, 0.0
        %v977 = vmax.f32 %v971, 0.0
        %v978 = vmax.f32 %v972, 0.0
        %v979 = vmax.f32 %v973, 0.0
        %v980 = vmax.f32 %v974, 0.0
        %981 = vst [vmem:[%s284] sm:$0xff] %v975
        %982 = vst [vmem:[%s284 + $0x8] sm:$0xff] %v976
        %983 = vst [vmem:[%s284 + $0x10] sm:$0xff] %v977
        %984 = vst [vmem:[%s284 + $0x18] sm:$0xff] %v978
        %985 = vst [vmem:[%s284 + $0x20] sm:$0xff] %v979
        %986 = vst [vmem:[%s284 + $0x28] sm:$0xff] %v980
        %s987 = sand.u32 %s163, 1
        %s988 = scalar_lea.sflag [#allocation4], %s987
        %s989 = sand.u32 %s163, 1
        %s990 = smul.addr %s989, 48
        %s991 = scalar_lea.vmem [#allocation7], %s990
        // Predicated region
        $region53: #{tpu_custom_call.1} parent=43 // pred_check
          %p992 = pneg %p173
        $region54: #{tpu_custom_call.1} parent=43 // pred_check_branch
          %994 = sbr.rel (%p992) target = $region56
        $region55: #{tpu_custom_call.1} parent=43 // pred_region
          %s995 = smul.u32 3, %s24
          %s997 = ssub.s32 768, 768
          %998 = vsyncadd %s988, %s997
          %s999 = smul.addr %s995, 128
          %s1000 = scalar_lea.hbm %s6, %s999
          %s1001 = sshll.u32 %s991, 4
          %s1002 = int_to_ptr.vmem [resolvable:$true] %s1001
          %1007 = dma.vmem_to_hbm [thread:$0]  %s1002, 768, %s1000, %s988, 384, 768, 24
        $region56: #{tpu_custom_call.1} parent=43 // pred_fallthru
          _
      $region44: #{tpu_custom_call.1} parent=5 // pred_fallthru
        _
      %p1008 = scmp.le.s32.totalorder 2, %s19
      // Predicated region
      $region57: #{tpu_custom_call.1} parent=5 // pred_check
        %p1009 = pneg %p1008
      $region58: #{tpu_custom_call.1} parent=5 // pred_check_branch
        %1011 = sbr.rel (%p1009) target = $region60
      $region59: #{tpu_custom_call.1} parent=5 // pred_region
        %s1012 = ssub.s32 %s19, 2
        // Predicated region
        $region61: #{tpu_custom_call.1} parent=59 // pred_check
          %p1013 = pneg %p179
        $region62: #{tpu_custom_call.1} parent=59 // pred_check_branch
          %1015 = sbr.rel (%p1013) target = $region64
        $region63: #{tpu_custom_call.1} parent=59 // pred_region
          %s1016 = sand.u32 %s164, 1
          %s1017 = scalar_lea.sflag [#allocation4], %s1016
          %s1018 = sand.u32 %s164, 1
          %s1019 = smul.addr %s1018, 48
          %s1020 = scalar_lea.vmem [#allocation7], %s1019
          %1021 = dma.done %s1017, 768
        $region64: #{tpu_custom_call.1} parent=59 // pred_fallthru
          _
      $region60: #{tpu_custom_call.1} parent=5 // pred_fallthru
        _
    $region6: #{tpu_custom_call.1} parent=1 // loop_footer
      %s23 = sadd.s32 1, %s19
    $region7: #{tpu_custom_call.1} parent=1 // loop_footer_branch
      %18 = sbr.rel target = $region3
    $region8: #{tpu_custom_call.1} parent=1 // loop_exit
      _
    %1022 = vsyncpa [#allocation3], 1
    %s1023 = scalar_lea.sflag [#allocation3], 1
    %1024 = vsyncpa %s1023, 1
    %1025 = vsyncpa [#allocation6], 1
    %1026 = vsyncpa [#allocation4], 1
    %s1027 = scalar_lea.sflag [#allocation4], 1
    %1028 = vsyncpa %s1027, 1

</llo_original>
